<compile_context>
chip_gen: v7x
topology: tpu7x:2x2x1
jax: 0.10.0
libtpu: 0.0.40
codegen_flags: <defaults>
</compile_context>

<pallas_src>
import functools

import jax
import jax.numpy as jnp
from jax.experimental import pallas as pl
from jax.experimental.pallas import tpu as pltpu

# ImageNet normalization constants (fixed in the module's __init__).
_MEAN = (0.485, 0.456, 0.406)
_STD = (0.229, 0.224, 0.225)
# Folded ToTensor (/255) + Normalize ((x-mean)/std)  ->  x*scale + bias
_SCALE = tuple(1.0 / (255.0 * s) for s in _STD)
_BIAS = tuple(-m / s for m, s in zip(_MEAN, _STD))

_LANES = 128
_SUBLANES = 8


def _make_fused_kernel(n_rows: int, sp_out: int, mask_len_pad: int, n_kpts: int):
    """One fused kernel: bilinear resize (1 MXU matmul) + normalize + keypoint mask."""

    def kernel(kpt_ref, x_ref, wt_ref, img_out_ref, mask_out_ref):
        # ---- resize: rows = (image, RGB channel), cols = flattened pixels ----
        # Y = X @ kron(A, B).T  ==  per-slab  A @ X2d @ B.T  (separable bilinear),
        # done as a single lane/sublane-dense MXU matmul for all slabs at once.
        y = jnp.dot(x_ref[...], wt_ref[...], preferred_element_type=jnp.float32)

        # ---- normalize: per-sublane (channel) scale/bias via iota + 2 selects,
        # then ONE full-tile mul+add (no per-channel sliced stores). -----------
        ch = jax.lax.broadcasted_iota(jnp.int32, (n_rows, sp_out), 0) % 3
        scale = jnp.where(ch == 0, _SCALE[0],
                          jnp.where(ch == 1, _SCALE[1], _SCALE[2]))
        bias = jnp.where(ch == 0, _BIAS[0],
                         jnp.where(ch == 1, _BIAS[1], _BIAS[2]))
        img_out_ref[...] = y * scale + bias

        # ---- keypoint scatter: flat-index compares vs SMEM scalars, OR tree --
        flat = jax.lax.broadcasted_iota(jnp.int32, (1, mask_len_pad), 1)
        hits = [flat == kpt_ref[i] for i in range(n_kpts)]   # static unroll
        while len(hits) > 1:                                  # balanced OR tree
            nxt = [jnp.logical_or(hits[j], hits[j + 1])
                   for j in range(0, len(hits) - 1, 2)]
            if len(hits) % 2:
                nxt.append(hits[-1])
            hits = nxt
        mask_out_ref[...] = jnp.where(hits[0], 1.0, 0.0)

    return kernel


@functools.partial(jax.jit, static_argnames=("input_size",))
def inference_forward(legend_patch, map_patch, keypoints, *, input_size=32):
    """Mirrors Inference.forward.

    legend_patch, map_patch : (H0, W0, 3) float32 BGR images in [0, 255]
    keypoints               : (N, 2) int32, columns are (x, y)
    Returns: (legend_img, map_img, patched_predicted)
    """
    mask_h, mask_w = map_patch.shape[:2]
    h0, w0 = legend_patch.shape[:2]
    n_kpts = keypoints.shape[0]
    s = input_size
    sp_in = h0 * w0
    sp_out = s * s

    # BGR->RGB + HWC->CHW + flatten.  Under jit this fuses into the single
    # layout copy that is needed anyway (the channel flip is free here).
    raw = jnp.stack([legend_patch, map_patch], axis=0).astype(jnp.float32)  # (2,h0,w0,3) BGR
    chw = jnp.transpose(raw[..., ::-1], (0, 3, 1, 2))                        # (2,3,h0,w0) RGB
    x_flat = chw.reshape(2 * 3, sp_in)

    # Pad the (image x channel) rows up to a sublane multiple so the matmul /
    # full-tile store are cleanly (8,128)-tiled.
    n_rows = 2 * 3
    n_rows_pad = ((n_rows + _SUBLANES - 1) // _SUBLANES) * _SUBLANES
    x_flat = jnp.pad(x_flat, ((0, n_rows_pad - n_rows), (0, 0)))

    # Kronecker-factored bilinear resize matrix, built from jax.image.resize of
    # identity matrices -> exactly the reference interpolation weights.  These
    # are constants under jit (folded at compile time).
    a = jax.image.resize(jnp.eye(h0, dtype=jnp.float32), (s, h0), method="bilinear")  # (s,h0)
    b = jax.image.resize(jnp.eye(w0, dtype=jnp.float32), (s, w0), method="bilinear")  # (s,w0)
    wt = jnp.kron(a, b).T                                                             # (h0*w0, s*s)

    # Flat keypoint indices precomputed outside the kernel; out-of-range
    # keypoints map to -1 so they can never alias another pixel.
    kx = keypoints[:, 0].astype(jnp.int32)
    ky = keypoints[:, 1].astype(jnp.int32)
    valid = (kx >= 0) & (kx < mask_w) & (ky >= 0) & (ky < mask_h)
    kpt_flat = jnp.where(valid, ky * mask_w + kx, -1)
    if n_kpts == 0:  # keep the kernel shape-valid even with no keypoints
        kpt_flat = jnp.full((1,), -1, jnp.int32)
        n_kpts_k = 1
    else:
        n_kpts_k = n_kpts

    # Pad the flat mask output to a multiple of 128 lanes (unmasked stores for
    # arbitrary patch sizes); sliced back below.
    mask_len = mask_h * mask_w
    mask_len_pad = ((mask_len + _LANES - 1) // _LANES) * _LANES

    kernel = _make_fused_kernel(n_rows_pad, sp_out, mask_len_pad, n_kpts_k)
    imgs_out, mask_flat = pl.pallas_call(
        kernel,
        out_shape=(
            jax.ShapeDtypeStruct((n_rows_pad, sp_out), jnp.float32),
            jax.ShapeDtypeStruct((1, mask_len_pad), jnp.float32),
        ),
        in_specs=[
            pl.BlockSpec(memory_space=pltpu.MemorySpace.SMEM),   # keypoint flat indices
            pl.BlockSpec(memory_space=pltpu.MemorySpace.VMEM),   # flattened image rows
            pl.BlockSpec(memory_space=pltpu.MemorySpace.VMEM),   # kron resize matrix
        ],
        out_specs=(
            pl.BlockSpec(memory_space=pltpu.MemorySpace.VMEM),
            pl.BlockSpec(memory_space=pltpu.MemorySpace.VMEM),
        ),
    )(kpt_flat, x_flat, wt)

    imgs = imgs_out[:n_rows].reshape(2, 3, s, s)
    legend_img = imgs[0:1]
    map_img = imgs[1:2]
    patched_predicted = mask_flat[0, :mask_len].reshape(mask_h, mask_w)
    return legend_img, map_img, patched_predicted


if __name__ == "__main__":
    key = jax.random.PRNGKey(0)
    k1, k2, k3, k4 = jax.random.split(key, 4)

    H0, W0 = 16, 16          # original patch spatial size (img_size)
    INPUT_SIZE = 32          # args.input_size for model preprocessing
    N_KPTS = 8

    # uint8-valued pixels (as produced by cv2 in the original pipeline), f32.
    legend_patch = jax.random.randint(k1, (H0, W0, 3), 0, 256, dtype=jnp.int32).astype(jnp.float32)
    map_patch = jax.random.randint(k2, (H0, W0, 3), 0, 256, dtype=jnp.int32).astype(jnp.float32)
    kx = jax.random.randint(k3, (N_KPTS, 1), 0, W0, dtype=jnp.int32)
    ky = jax.random.randint(k4, (N_KPTS, 1), 0, H0, dtype=jnp.int32)
    keypoints = jnp.concatenate([kx, ky], axis=1)   # (N, 2) of (x, y)

    legend_img, map_img, mask = inference_forward(
        legend_patch, map_patch, keypoints, input_size=INPUT_SIZE
    )
    jax.block_until_ready((legend_img, map_img, mask))

    # Shape checks
    assert legend_img.shape == (1, 3, INPUT_SIZE, INPUT_SIZE)
    assert map_img.shape == (1, 3, INPUT_SIZE, INPUT_SIZE)
    assert mask.shape == (H0, W0)

    # Reference checks (pure JAX) for correctness of the fused kernel.
    def ref_norm(img):
        rgb = img[..., ::-1]
        r = jax.image.resize(rgb, (INPUT_SIZE, INPUT_SIZE, 3), method="bilinear")
        chw = jnp.transpose(r, (2, 0, 1)) / 255.0
        mean = jnp.array(_MEAN, jnp.float32).reshape(3, 1, 1)
        std = jnp.array(_STD, jnp.float32).reshape(3, 1, 1)
        return ((chw - mean) / std)[None]

    ref_mask = jnp.zeros((H0, W0), jnp.float32).at[keypoints[:, 1], keypoints[:, 0]].set(1.0)
    assert jnp.allclose(legend_img, ref_norm(legend_patch), atol=1e-4)
    assert jnp.allclose(map_img, ref_norm(map_patch), atol=1e-4)
    assert jnp.array_equal(mask, ref_mask)

    print("KERNEL_OK")
</pallas_src>

<mosaic_0001>
module attributes {stable_mosaic.version = 11 : i64} {
  func.func @kernel(%arg0: memref<8xi32, #tpu.memory_space<smem>>, %arg1: memref<8x256xf32, #tpu.memory_space<vmem>>, %arg2: memref<256x1024xf32, #tpu.memory_space<vmem>>, %arg3: memref<8x1024xf32, #tpu.memory_space<vmem>>, %arg4: memref<1x256xf32, #tpu.memory_space<vmem>>) attributes {dimension_semantics = [], scalar_prefetch = 0 : i64, scratch_operands = 0 : i64, tpu.core_type = #tpu.core_type<tc>} {
    %c0 = arith.constant 0 : index
    %c0_0 = arith.constant 0 : index
    %0 = vector.load %arg1[%c0, %c0_0] : memref<8x256xf32, #tpu.memory_space<vmem>>, vector<8x256xf32>
    %c0_1 = arith.constant 0 : index
    %c0_2 = arith.constant 0 : index
    %1 = vector.load %arg2[%c0_1, %c0_2] : memref<256x1024xf32, #tpu.memory_space<vmem>>, vector<256x1024xf32>
    %cst = arith.constant dense<0.000000e+00> : vector<8x1024xf32>
    %2 = tpu.matmul %0, %1, %cst {dimension_numbers = #tpu.dot_dimension_numbers<[1], [0], [0], [1], [0, 0, 1, 1], [], []>} : vector<8x256xf32>, vector<256x1024xf32>, vector<8x1024xf32> -> vector<8x1024xf32>
    %3 = tpu.iota {dimensions = array<i32: 0>} : vector<8x1024xi32>
    %c3_i32 = arith.constant 3 : i32
    %c0_i32 = arith.constant 0 : i32
    %4 = arith.cmpi eq, %c3_i32, %c0_i32 : i32
    %c1_i32 = arith.constant 1 : i32
    %5 = arith.select %4, %c1_i32, %c3_i32 : i32
    %6 = vector.broadcast %5 : i32 to vector<8x1024xi32>
    %7 = arith.remsi %3, %6 : vector<8x1024xi32>
    %c0_i32_3 = arith.constant 0 : i32
    %8 = vector.broadcast %c0_i32_3 : i32 to vector<8x1024xi32>
    %9 = arith.cmpi ne, %7, %8 : vector<8x1024xi32>
    %c0_i32_4 = arith.constant 0 : i32
    %10 = vector.broadcast %c0_i32_4 : i32 to vector<8x1024xi32>
    %11 = arith.cmpi slt, %7, %10 : vector<8x1024xi32>
    %c0_i32_5 = arith.constant 0 : i32
    %12 = arith.cmpi slt, %5, %c0_i32_5 : i32
    %13 = vector.broadcast %12 : i1 to vector<8x1024xi1>
    %14 = vector.broadcast %13 : vector<8x1024xi1> to vector<8x1024xi1>
    %15 = arith.xori %11, %14 : vector<8x1024xi1>
    %16 = arith.andi %15, %9 : vector<8x1024xi1>
    %17 = vector.broadcast %5 : i32 to vector<8x1024xi32>
    %18 = arith.addi %7, %17 : vector<8x1024xi32>
    %19 = arith.select %16, %18, %7 : vector<8x1024xi1>, vector<8x1024xi32>
    %c0_i32_6 = arith.constant 0 : i32
    %20 = vector.broadcast %c0_i32_6 : i32 to vector<8x1024xi32>
    %21 = arith.cmpi eq, %19, %20 : vector<8x1024xi32>
    %c1_i32_7 = arith.constant 1 : i32
    %22 = vector.broadcast %c1_i32_7 : i32 to vector<8x1024xi32>
    %23 = arith.cmpi eq, %19, %22 : vector<8x1024xi32>
    %cst_8 = arith.constant 0.0175070036 : f32
    %cst_9 = arith.constant 0.0174291935 : f32
    %24 = vector.broadcast %cst_8 : f32 to vector<8x1024xf32>
    %25 = vector.broadcast %cst_9 : f32 to vector<8x1024xf32>
    %26 = arith.select %23, %24, %25 : vector<8x1024xi1>, vector<8x1024xf32>
    %cst_10 = arith.constant 0.0171247534 : f32
    %27 = vector.broadcast %cst_10 : f32 to vector<8x1024xf32>
    %28 = arith.select %21, %27, %26 : vector<8x1024xi1>, vector<8x1024xf32>
    %c0_i32_11 = arith.constant 0 : i32
    %29 = vector.broadcast %c0_i32_11 : i32 to vector<8x1024xi32>
    %30 = arith.cmpi eq, %19, %29 : vector<8x1024xi32>
    %c1_i32_12 = arith.constant 1 : i32
    %31 = vector.broadcast %c1_i32_12 : i32 to vector<8x1024xi32>
    %32 = arith.cmpi eq, %19, %31 : vector<8x1024xi32>
    %cst_13 = arith.constant -2.03571439 : f32
    %cst_14 = arith.constant -1.80444443 : f32
    %33 = vector.broadcast %cst_13 : f32 to vector<8x1024xf32>
    %34 = vector.broadcast %cst_14 : f32 to vector<8x1024xf32>
    %35 = arith.select %32, %33, %34 : vector<8x1024xi1>, vector<8x1024xf32>
    %cst_15 = arith.constant -2.11790395 : f32
    %36 = vector.broadcast %cst_15 : f32 to vector<8x1024xf32>
    %37 = arith.select %30, %36, %35 : vector<8x1024xi1>, vector<8x1024xf32>
    %38 = arith.mulf %2, %28 : vector<8x1024xf32>
    %39 = arith.addf %38, %37 : vector<8x1024xf32>
    %c0_16 = arith.constant 0 : index
    %c0_17 = arith.constant 0 : index
    %40 = vector.load %arg3[%c0_16, %c0_17] : memref<8x1024xf32, #tpu.memory_space<vmem>>, vector<8x1024xf32>
    tpu.vector_store %arg3[%c0_16, %c0_17], %39 {strides = array<i32>} : memref<8x1024xf32, #tpu.memory_space<vmem>>, vector<8x1024xf32>,
    %41 = tpu.iota {dimensions = array<i32: 1>} : vector<1x256xi32>
    %c0_18 = arith.constant 0 : index
    %42 = memref.load %arg0[%c0_18] : memref<8xi32, #tpu.memory_space<smem>>
    %43 = vector.broadcast %42 : i32 to vector<1x256xi32>
    %44 = arith.cmpi eq, %41, %43 : vector<1x256xi32>
    %c1 = arith.constant 1 : index
    %45 = memref.load %arg0[%c1] : memref<8xi32, #tpu.memory_space<smem>>
    %46 = vector.broadcast %45 : i32 to vector<1x256xi32>
    %47 = arith.cmpi eq, %41, %46 : vector<1x256xi32>
    %c2 = arith.constant 2 : index
    %48 = memref.load %arg0[%c2] : memref<8xi32, #tpu.memory_space<smem>>
    %49 = vector.broadcast %48 : i32 to vector<1x256xi32>
    %50 = arith.cmpi eq, %41, %49 : vector<1x256xi32>
    %c3 = arith.constant 3 : index
    %51 = memref.load %arg0[%c3] : memref<8xi32, #tpu.memory_space<smem>>
    %52 = vector.broadcast %51 : i32 to vector<1x256xi32>
    %53 = arith.cmpi eq, %41, %52 : vector<1x256xi32>
    %c4 = arith.constant 4 : index
    %54 = memref.load %arg0[%c4] : memref<8xi32, #tpu.memory_space<smem>>
    %55 = vector.broadcast %54 : i32 to vector<1x256xi32>
    %56 = arith.cmpi eq, %41, %55 : vector<1x256xi32>
    %c5 = arith.constant 5 : index
    %57 = memref.load %arg0[%c5] : memref<8xi32, #tpu.memory_space<smem>>
    %58 = vector.broadcast %57 : i32 to vector<1x256xi32>
    %59 = arith.cmpi eq, %41, %58 : vector<1x256xi32>
    %c6 = arith.constant 6 : index
    %60 = memref.load %arg0[%c6] : memref<8xi32, #tpu.memory_space<smem>>
    %61 = vector.broadcast %60 : i32 to vector<1x256xi32>
    %62 = arith.cmpi eq, %41, %61 : vector<1x256xi32>
    %c7 = arith.constant 7 : index
    %63 = memref.load %arg0[%c7] : memref<8xi32, #tpu.memory_space<smem>>
    %64 = vector.broadcast %63 : i32 to vector<1x256xi32>
    %65 = arith.cmpi eq, %41, %64 : vector<1x256xi32>
    %66 = arith.ori %44, %47 : vector<1x256xi1>
    %67 = arith.ori %50, %53 : vector<1x256xi1>
    %68 = arith.ori %56, %59 : vector<1x256xi1>
    %69 = arith.ori %62, %65 : vector<1x256xi1>
    %70 = arith.ori %66, %67 : vector<1x256xi1>
    %71 = arith.ori %68, %69 : vector<1x256xi1>
    %72 = arith.ori %70, %71 : vector<1x256xi1>
    %cst_19 = arith.constant 1.000000e+00 : f32
    %cst_20 = arith.constant 0.000000e+00 : f32
    %73 = vector.broadcast %cst_19 : f32 to vector<1x256xf32>
    %74 = vector.broadcast %cst_20 : f32 to vector<1x256xf32>
    %75 = arith.select %72, %73, %74 : vector<1x256xi1>, vector<1x256xf32>
    %c0_21 = arith.constant 0 : index
    %c0_22 = arith.constant 0 : index
    %76 = vector.load %arg4[%c0_21, %c0_22] : memref<1x256xf32, #tpu.memory_space<vmem>>, vector<1x256xf32>
    tpu.vector_store %arg4[%c0_21, %c0_22], %75 {strides = array<i32>} : memref<1x256xf32, #tpu.memory_space<vmem>>, vector<1x256xf32>,
    return
  }
}

</mosaic_0001>

<llo_original>
// kernel: squeeze.5
$region0: #{squeeze.5}
  %s0 = inlined_call_operand.vmem [shape: f32[256], index: 0, kind: input, shape index: {}]
  %s1 = inlined_call_operand.hbm [shape: f32[16,16], index: 1, kind: output, shape index: {}]
  $region1: #{squeeze.5} parent=0
    #allocation0 [shape = 'u8[8192]{0}', space=vmem, size = 0x2000, scoped, tag = 'operand span for operand 1']
    #allocation1 [shape = 's32[1]{0}', space=sflag, size = 0x4, scoped, tag = 'scoped memory for squeeze.5']
    #allocation2 [shape = 'u8[4096]{0}', space=vmem, size = 0x1000, scoped, tag = 'scoped mem for input reshape']
    %2 = vsyncpa [#allocation1], 0
    %s4 = sshllo.u32 0, 2
    %v5 = vld [vmem:[%s0] sm:%s4]
    %6 = vst [vmem:[#allocation2] sm:%s4] %v5
    %v7 = vld [vmem:[#allocation2] sm:$0x3]
    %vm8 = vcmask 130048
    %9 = vst.msk [vmem:[#allocation0] ss:$8 sm:$0x3] %vm8, %v7
    %v10 = vld [vmem:[#allocation2] sm:$0x3]
    %11 = vrot.lane.b32.xlu0 %v10, 112
    %v12 = vpop.permute.xlu0 %11
    %vm13 = vcmask 130048
    %s14 = scalar_lea.vmem [#allocation0], 1
    %15 = vst.msk [vmem:[%s14] ss:$8 sm:$0x3] %vm13, %v12
    %v16 = vld [vmem:[#allocation2] sm:$0x3]
    %17 = vrot.lane.b32.xlu0 %v16, 96
    %v18 = vpop.permute.xlu0 %17
    %vm19 = vcmask 130048
    %s20 = scalar_lea.vmem [#allocation0], 2
    %21 = vst.msk [vmem:[%s20] ss:$8 sm:$0x3] %vm19, %v18
    %v22 = vld [vmem:[#allocation2] sm:$0x3]
    %23 = vrot.lane.b32.xlu0 %v22, 80
    %v24 = vpop.permute.xlu0 %23
    %vm25 = vcmask 130048
    %s26 = scalar_lea.vmem [#allocation0], 3
    %27 = vst.msk [vmem:[%s26] ss:$8 sm:$0x3] %vm25, %v24
    %v28 = vld [vmem:[#allocation2] sm:$0x3]
    %29 = vrot.lane.b32.xlu0 %v28, 64
    %v30 = vpop.permute.xlu0 %29
    %vm31 = vcmask 130048
    %s32 = scalar_lea.vmem [#allocation0], 4
    %33 = vst.msk [vmem:[%s32] ss:$8 sm:$0x3] %vm31, %v30
    %v34 = vld [vmem:[#allocation2] sm:$0x3]
    %35 = vrot.lane.b32.xlu0 %v34, 48
    %v36 = vpop.permute.xlu0 %35
    %vm37 = vcmask 130048
    %s38 = scalar_lea.vmem [#allocation0], 5
    %39 = vst.msk [vmem:[%s38] ss:$8 sm:$0x3] %vm37, %v36
    %v40 = vld [vmem:[#allocation2] sm:$0x3]
    %41 = vrot.lane.b32.xlu0 %v40, 32
    %v42 = vpop.permute.xlu0 %41
    %vm43 = vcmask 130048
    %s44 = scalar_lea.vmem [#allocation0], 6
    %45 = vst.msk [vmem:[%s44] ss:$8 sm:$0x3] %vm43, %v42
    %v46 = vld [vmem:[#allocation2] sm:$0x3]
    %47 = vrot.lane.b32.xlu0 %v46, 16
    %v48 = vpop.permute.xlu0 %47
    %vm49 = vcmask 130048
    %s50 = scalar_lea.vmem [#allocation0], 7
    %51 = vst.msk [vmem:[%s50] ss:$8 sm:$0x3] %vm49, %v48
    %s53 = ssub.s32 256, 256
    %54 = vsyncadd [#allocation1], %s53
    %s56 = sshll.u32 [#allocation0], 4
    %s57 = int_to_ptr.vmem [resolvable:$true] %s56
    %59 = dma.vmem_to_hbm [thread:$0]  %s57, 256, %s1, [#allocation1]
    %60 = dma.done [#allocation1], 256
    %61 = vsyncpa [#allocation1], 1

// kernel: inference_forward.1
$region0: #{inference_forward.1}
  #allocation0 [shape = 'u32[]', space=smem, size = 0x4, offset = 0x4, fixed_abs, tag = 'smem constant byte address 0x4 - core index']
  #allocation1 [shape = 'u32[144,128]{1,0:T(1,128)}', space=vmem, size = 0x12000, scoped, tag = 'internal scratch']
  %s0 = inlined_call_operand.vmem [shape: s32[8], index: 0, kind: input, shape index: {}]
  %s1 = inlined_call_operand.vmem [shape: f32[8,256], index: 1, kind: input, shape index: {}]
  %s2 = inlined_call_operand.vmem [shape: f32[256,1024], index: 2, kind: input, shape index: {}]
  %s3 = inlined_call_operand.vmem [shape: f32[8,1024], index: 3, kind: output, shape index: {0}]
  %s4 = inlined_call_operand.vmem [shape: f32[1,256], index: 4, kind: output, shape index: {1}]
  %5 = xla_tuple %s3, %s4
  %s6 = sld [smem:[#allocation0]]
  $region34: #{inference_forward.1} parent=0
    _
  %s8 = ssub.s32 1, %s6
  %s9 = scalar_select 0, %s8, %s6
  $region1: #{inference_forward.1} parent=0
    #allocation2 [shape = 'u8[512]{0}', space=smem, size = 0x200, scoped, tag = 'input window, operand 0, single buffered']
    #allocation3 [shape = 's32[1]{0}', space=sflag, size = 0x4, scoped, tag = 'scoped memory for inference_forward.1']
    %10 = vsyncpa [#allocation3], 0
    // Predicated region
    $region2: #{inference_forward.1} parent=1 // pred_check
      _
    $region3: #{inference_forward.1} parent=1 // pred_check_branch
      %12 = sbr.rel (0) target = $region5
    $region4: #{inference_forward.1} parent=1 // pred_region
      %s14 = ssub.s32 16, 16
      %15 = vsyncadd [#allocation3], %s14
      %s17 = sshll.u32 %s0, 4
      %s18 = int_to_ptr.vmem [resolvable:$true] %s17
      %20 = dma.vmem_to_smem %s18, 16, [#allocation2], [#allocation3]
    $region5: #{inference_forward.1} parent=1 // pred_fallthru
      _
    // Predicated region
    $region6: #{inference_forward.1} parent=1 // pred_check
      _
    $region7: #{inference_forward.1} parent=1 // pred_check_branch
      %22 = sbr.rel (0) target = $region9
    $region8: #{inference_forward.1} parent=1 // pred_region
      _
    $region9: #{inference_forward.1} parent=1 // pred_fallthru
      _
    // Predicated region
    $region10: #{inference_forward.1} parent=1 // pred_check
      _
    $region11: #{inference_forward.1} parent=1 // pred_check_branch
      %24 = sbr.rel (0) target = $region13
    $region12: #{inference_forward.1} parent=1 // pred_region
      _
    $region13: #{inference_forward.1} parent=1 // pred_fallthru
      _
    // Predicated region
    $region14: #{inference_forward.1} parent=1 // pred_check
      _
    $region15: #{inference_forward.1} parent=1 // pred_check_branch
      %26 = sbr.rel (0) target = $region17
    $region16: #{inference_forward.1} parent=1 // pred_region
      %27 = dma.done [#allocation3], 16
    $region17: #{inference_forward.1} parent=1 // pred_fallthru
      _
    %28 = sfence
    %v29 = vld [vmem:[%s1] sm:$0xff]
    %v30 = vld [vmem:[%s1 + $0x8] sm:$0xff]
    %v31 = vld [vmem:[%s2] sm:$0xff]
    %v32 = vld [vmem:[%s2 + $0x8] sm:$0xff]
    %v33 = vld [vmem:[%s2 + $0x10] sm:$0xff]
    %v34 = vld [vmem:[%s2 + $0x18] sm:$0xff]
    %v35 = vld [vmem:[%s2 + $0x20] sm:$0xff]
    %v36 = vld [vmem:[%s2 + $0x28] sm:$0xff]
    %v37 = vld [vmem:[%s2 + $0x30] sm:$0xff]
    %v38 = vld [vmem:[%s2 + $0x38] sm:$0xff]
    %v39 = vld [vmem:[%s2 + $0x40] sm:$0xff]
    %v40 = vld [vmem:[%s2 + $0x48] sm:$0xff]
    %v41 = vld [vmem:[%s2 + $0x50] sm:$0xff]
    %v42 = vld [vmem:[%s2 + $0x58] sm:$0xff]
    %v43 = vld [vmem:[%s2 + $0x60] sm:$0xff]
    %v44 = vld [vmem:[%s2 + $0x68] sm:$0xff]
    %v45 = vld [vmem:[%s2 + $0x70] sm:$0xff]
    %v46 = vld [vmem:[%s2 + $0x78] sm:$0xff]
    %v47 = vld [vmem:[%s2 + $0x80] sm:$0xff]
    %v48 = vld [vmem:[%s2 + $0x88] sm:$0xff]
    %v49 = vld [vmem:[%s2 + $0x90] sm:$0xff]
    %v50 = vld [vmem:[%s2 + $0x98] sm:$0xff]
    %v51 = vld [vmem:[%s2 + $0xa0] sm:$0xff]
    %v52 = vld [vmem:[%s2 + $0xa8] sm:$0xff]
    %v53 = vld [vmem:[%s2 + $0xb0] sm:$0xff]
    %v54 = vld [vmem:[%s2 + $0xb8] sm:$0xff]
    %v55 = vld [vmem:[%s2 + $0xc0] sm:$0xff]
    %v56 = vld [vmem:[%s2 + $0xc8] sm:$0xff]
    %v57 = vld [vmem:[%s2 + $0xd0] sm:$0xff]
    %v58 = vld [vmem:[%s2 + $0xd8] sm:$0xff]
    %v59 = vld [vmem:[%s2 + $0xe0] sm:$0xff]
    %v60 = vld [vmem:[%s2 + $0xe8] sm:$0xff]
    %v61 = vld [vmem:[%s2 + $0xf0] sm:$0xff]
    %v62 = vld [vmem:[%s2 + $0xf8] sm:$0xff]
    %v63 = vld [vmem:[%s2 + $0x100] sm:$0xff]
    %v64 = vld [vmem:[%s2 + $0x108] sm:$0xff]
    %v65 = vld [vmem:[%s2 + $0x110] sm:$0xff]
    %v66 = vld [vmem:[%s2 + $0x118] sm:$0xff]
    %v67 = vld [vmem:[%s2 + $0x120] sm:$0xff]
    %v68 = vld [vmem:[%s2 + $0x128] sm:$0xff]
    %v69 = vld [vmem:[%s2 + $0x130] sm:$0xff]
    %v70 = vld [vmem:[%s2 + $0x138] sm:$0xff]
    %v71 = vld [vmem:[%s2 + $0x140] sm:$0xff]
    %v72 = vld [vmem:[%s2 + $0x148] sm:$0xff]
    %v73 = vld [vmem:[%s2 + $0x150] sm:$0xff]
    %v74 = vld [vmem:[%s2 + $0x158] sm:$0xff]
    %v75 = vld [vmem:[%s2 + $0x160] sm:$0xff]
    %v76 = vld [vmem:[%s2 + $0x168] sm:$0xff]
    %v77 = vld [vmem:[%s2 + $0x170] sm:$0xff]
    %v78 = vld [vmem:[%s2 + $0x178] sm:$0xff]
    %v79 = vld [vmem:[%s2 + $0x180] sm:$0xff]
    %v80 = vld [vmem:[%s2 + $0x188] sm:$0xff]
    %v81 = vld [vmem:[%s2 + $0x190] sm:$0xff]
    %v82 = vld [vmem:[%s2 + $0x198] sm:$0xff]
    %v83 = vld [vmem:[%s2 + $0x1a0] sm:$0xff]
    %v84 = vld [vmem:[%s2 + $0x1a8] sm:$0xff]
    %v85 = vld [vmem:[%s2 + $0x1b0] sm:$0xff]
    %v86 = vld [vmem:[%s2 + $0x1b8] sm:$0xff]
    %v87 = vld [vmem:[%s2 + $0x1c0] sm:$0xff]
    %v88 = vld [vmem:[%s2 + $0x1c8] sm:$0xff]
    %v89 = vld [vmem:[%s2 + $0x1d0] sm:$0xff]
    %v90 = vld [vmem:[%s2 + $0x1d8] sm:$0xff]
    %v91 = vld [vmem:[%s2 + $0x1e0] sm:$0xff]
    %v92 = vld [vmem:[%s2 + $0x1e8] sm:$0xff]
    %v93 = vld [vmem:[%s2 + $0x1f0] sm:$0xff]
    %v94 = vld [vmem:[%s2 + $0x1f8] sm:$0xff]
    %v95 = vld [vmem:[%s2 + $0x200] sm:$0xff]
    %v96 = vld [vmem:[%s2 + $0x208] sm:$0xff]
    %v97 = vld [vmem:[%s2 + $0x210] sm:$0xff]
    %v98 = vld [vmem:[%s2 + $0x218] sm:$0xff]
    %v99 = vld [vmem:[%s2 + $0x220] sm:$0xff]
    %v100 = vld [vmem:[%s2 + $0x228] sm:$0xff]
    %v101 = vld [vmem:[%s2 + $0x230] sm:$0xff]
    %v102 = vld [vmem:[%s2 + $0x238] sm:$0xff]
    %v103 = vld [vmem:[%s2 + $0x240] sm:$0xff]
    %v104 = vld [vmem:[%s2 + $0x248] sm:$0xff]
    %v105 = vld [vmem:[%s2 + $0x250] sm:$0xff]
    %v106 = vld [vmem:[%s2 + $0x258] sm:$0xff]
    %v107 = vld [vmem:[%s2 + $0x260] sm:$0xff]
    %v108 = vld [vmem:[%s2 + $0x268] sm:$0xff]
    %v109 = vld [vmem:[%s2 + $0x270] sm:$0xff]
    %v110 = vld [vmem:[%s2 + $0x278] sm:$0xff]
    %v111 = vld [vmem:[%s2 + $0x280] sm:$0xff]
    %v112 = vld [vmem:[%s2 + $0x288] sm:$0xff]
    %v113 = vld [vmem:[%s2 + $0x290] sm:$0xff]
    %v114 = vld [vmem:[%s2 + $0x298] sm:$0xff]
    %v115 = vld [vmem:[%s2 + $0x2a0] sm:$0xff]
    %v116 = vld [vmem:[%s2 + $0x2a8] sm:$0xff]
    %v117 = vld [vmem:[%s2 + $0x2b0] sm:$0xff]
    %v118 = vld [vmem:[%s2 + $0x2b8] sm:$0xff]
    %v119 = vld [vmem:[%s2 + $0x2c0] sm:$0xff]
    %v120 = vld [vmem:[%s2 + $0x2c8] sm:$0xff]
    %v121 = vld [vmem:[%s2 + $0x2d0] sm:$0xff]
    %v122 = vld [vmem:[%s2 + $0x2d8] sm:$0xff]
    %v123 = vld [vmem:[%s2 + $0x2e0] sm:$0xff]
    %v124 = vld [vmem:[%s2 + $0x2e8] sm:$0xff]
    %v125 = vld [vmem:[%s2 + $0x2f0] sm:$0xff]
    %v126 = vld [vmem:[%s2 + $0x2f8] sm:$0xff]
    %v127 = vld [vmem:[%s2 + $0x300] sm:$0xff]
    %v128 = vld [vmem:[%s2 + $0x308] sm:$0xff]
    %v129 = vld [vmem:[%s2 + $0x310] sm:$0xff]
    %v130 = vld [vmem:[%s2 + $0x318] sm:$0xff]
    %v131 = vld [vmem:[%s2 + $0x320] sm:$0xff]
    %v132 = vld [vmem:[%s2 + $0x328] sm:$0xff]
    %v133 = vld [vmem:[%s2 + $0x330] sm:$0xff]
    %v134 = vld [vmem:[%s2 + $0x338] sm:$0xff]
    %v135 = vld [vmem:[%s2 + $0x340] sm:$0xff]
    %v136 = vld [vmem:[%s2 + $0x348] sm:$0xff]
    %v137 = vld [vmem:[%s2 + $0x350] sm:$0xff]
    %v138 = vld [vmem:[%s2 + $0x358] sm:$0xff]
    %v139 = vld [vmem:[%s2 + $0x360] sm:$0xff]
    %v140 = vld [vmem:[%s2 + $0x368] sm:$0xff]
    %v141 = vld [vmem:[%s2 + $0x370] sm:$0xff]
    %v142 = vld [vmem:[%s2 + $0x378] sm:$0xff]
    %v143 = vld [vmem:[%s2 + $0x380] sm:$0xff]
    %v144 = vld [vmem:[%s2 + $0x388] sm:$0xff]
    %v145 = vld [vmem:[%s2 + $0x390] sm:$0xff]
    %v146 = vld [vmem:[%s2 + $0x398] sm:$0xff]
    %v147 = vld [vmem:[%s2 + $0x3a0] sm:$0xff]
    %v148 = vld [vmem:[%s2 + $0x3a8] sm:$0xff]
    %v149 = vld [vmem:[%s2 + $0x3b0] sm:$0xff]
    %v150 = vld [vmem:[%s2 + $0x3b8] sm:$0xff]
    %v151 = vld [vmem:[%s2 + $0x3c0] sm:$0xff]
    %v152 = vld [vmem:[%s2 + $0x3c8] sm:$0xff]
    %v153 = vld [vmem:[%s2 + $0x3d0] sm:$0xff]
    %v154 = vld [vmem:[%s2 + $0x3d8] sm:$0xff]
    %v155 = vld [vmem:[%s2 + $0x3e0] sm:$0xff]
    %v156 = vld [vmem:[%s2 + $0x3e8] sm:$0xff]
    %v157 = vld [vmem:[%s2 + $0x3f0] sm:$0xff]
    %v158 = vld [vmem:[%s2 + $0x3f8] sm:$0xff]
    %v159 = vld [vmem:[%s2 + $0x400] sm:$0xff]
    %v160 = vld [vmem:[%s2 + $0x408] sm:$0xff]
    %v161 = vld [vmem:[%s2 + $0x410] sm:$0xff]
    %v162 = vld [vmem:[%s2 + $0x418] sm:$0xff]
    %v163 = vld [vmem:[%s2 + $0x420] sm:$0xff]
    %v164 = vld [vmem:[%s2 + $0x428] sm:$0xff]
    %v165 = vld [vmem:[%s2 + $0x430] sm:$0xff]
    %v166 = vld [vmem:[%s2 + $0x438] sm:$0xff]
    %v167 = vld [vmem:[%s2 + $0x440] sm:$0xff]
    %v168 = vld [vmem:[%s2 + $0x448] sm:$0xff]
    %v169 = vld [vmem:[%s2 + $0x450] sm:$0xff]
    %v170 = vld [vmem:[%s2 + $0x458] sm:$0xff]
    %v171 = vld [vmem:[%s2 + $0x460] sm:$0xff]
    %v172 = vld [vmem:[%s2 + $0x468] sm:$0xff]
    %v173 = vld [vmem:[%s2 + $0x470] sm:$0xff]
    %v174 = vld [vmem:[%s2 + $0x478] sm:$0xff]
    %v175 = vld [vmem:[%s2 + $0x480] sm:$0xff]
    %v176 = vld [vmem:[%s2 + $0x488] sm:$0xff]
    %v177 = vld [vmem:[%s2 + $0x490] sm:$0xff]
    %v178 = vld [vmem:[%s2 + $0x498] sm:$0xff]
    %v179 = vld [vmem:[%s2 + $0x4a0] sm:$0xff]
    %v180 = vld [vmem:[%s2 + $0x4a8] sm:$0xff]
    %v181 = vld [vmem:[%s2 + $0x4b0] sm:$0xff]
    %v182 = vld [vmem:[%s2 + $0x4b8] sm:$0xff]
    %v183 = vld [vmem:[%s2 + $0x4c0] sm:$0xff]
    %v184 = vld [vmem:[%s2 + $0x4c8] sm:$0xff]
    %v185 = vld [vmem:[%s2 + $0x4d0] sm:$0xff]
    %v186 = vld [vmem:[%s2 + $0x4d8] sm:$0xff]
    %v187 = vld [vmem:[%s2 + $0x4e0] sm:$0xff]
    %v188 = vld [vmem:[%s2 + $0x4e8] sm:$0xff]
    %v189 = vld [vmem:[%s2 + $0x4f0] sm:$0xff]
    %v190 = vld [vmem:[%s2 + $0x4f8] sm:$0xff]
    %v191 = vld [vmem:[%s2 + $0x500] sm:$0xff]
    %v192 = vld [vmem:[%s2 + $0x508] sm:$0xff]
    %v193 = vld [vmem:[%s2 + $0x510] sm:$0xff]
    %v194 = vld [vmem:[%s2 + $0x518] sm:$0xff]
    %v195 = vld [vmem:[%s2 + $0x520] sm:$0xff]
    %v196 = vld [vmem:[%s2 + $0x528] sm:$0xff]
    %v197 = vld [vmem:[%s2 + $0x530] sm:$0xff]
    %v198 = vld [vmem:[%s2 + $0x538] sm:$0xff]
    %v199 = vld [vmem:[%s2 + $0x540] sm:$0xff]
    %v200 = vld [vmem:[%s2 + $0x548] sm:$0xff]
    %v201 = vld [vmem:[%s2 + $0x550] sm:$0xff]
    %v202 = vld [vmem:[%s2 + $0x558] sm:$0xff]
    %v203 = vld [vmem:[%s2 + $0x560] sm:$0xff]
    %v204 = vld [vmem:[%s2 + $0x568] sm:$0xff]
    %v205 = vld [vmem:[%s2 + $0x570] sm:$0xff]
    %v206 = vld [vmem:[%s2 + $0x578] sm:$0xff]
    %v207 = vld [vmem:[%s2 + $0x580] sm:$0xff]
    %v208 = vld [vmem:[%s2 + $0x588] sm:$0xff]
    %v209 = vld [vmem:[%s2 + $0x590] sm:$0xff]
    %v210 = vld [vmem:[%s2 + $0x598] sm:$0xff]
    %v211 = vld [vmem:[%s2 + $0x5a0] sm:$0xff]
    %v212 = vld [vmem:[%s2 + $0x5a8] sm:$0xff]
    %v213 = vld [vmem:[%s2 + $0x5b0] sm:$0xff]
    %v214 = vld [vmem:[%s2 + $0x5b8] sm:$0xff]
    %v215 = vld [vmem:[%s2 + $0x5c0] sm:$0xff]
    %v216 = vld [vmem:[%s2 + $0x5c8] sm:$0xff]
    %v217 = vld [vmem:[%s2 + $0x5d0] sm:$0xff]
    %v218 = vld [vmem:[%s2 + $0x5d8] sm:$0xff]
    %v219 = vld [vmem:[%s2 + $0x5e0] sm:$0xff]
    %v220 = vld [vmem:[%s2 + $0x5e8] sm:$0xff]
    %v221 = vld [vmem:[%s2 + $0x5f0] sm:$0xff]
    %v222 = vld [vmem:[%s2 + $0x5f8] sm:$0xff]
    %v223 = vld [vmem:[%s2 + $0x600] sm:$0xff]
    %v224 = vld [vmem:[%s2 + $0x608] sm:$0xff]
    %v225 = vld [vmem:[%s2 + $0x610] sm:$0xff]
    %v226 = vld [vmem:[%s2 + $0x618] sm:$0xff]
    %v227 = vld [vmem:[%s2 + $0x620] sm:$0xff]
    %v228 = vld [vmem:[%s2 + $0x628] sm:$0xff]
    %v229 = vld [vmem:[%s2 + $0x630] sm:$0xff]
    %v230 = vld [vmem:[%s2 + $0x638] sm:$0xff]
    %v231 = vld [vmem:[%s2 + $0x640] sm:$0xff]
    %v232 = vld [vmem:[%s2 + $0x648] sm:$0xff]
    %v233 = vld [vmem:[%s2 + $0x650] sm:$0xff]
    %v234 = vld [vmem:[%s2 + $0x658] sm:$0xff]
    %v235 = vld [vmem:[%s2 + $0x660] sm:$0xff]
    %v236 = vld [vmem:[%s2 + $0x668] sm:$0xff]
    %v237 = vld [vmem:[%s2 + $0x670] sm:$0xff]
    %v238 = vld [vmem:[%s2 + $0x678] sm:$0xff]
    %v239 = vld [vmem:[%s2 + $0x680] sm:$0xff]
    %v240 = vld [vmem:[%s2 + $0x688] sm:$0xff]
    %v241 = vld [vmem:[%s2 + $0x690] sm:$0xff]
    %v242 = vld [vmem:[%s2 + $0x698] sm:$0xff]
    %v243 = vld [vmem:[%s2 + $0x6a0] sm:$0xff]
    %v244 = vld [vmem:[%s2 + $0x6a8] sm:$0xff]
    %v245 = vld [vmem:[%s2 + $0x6b0] sm:$0xff]
    %v246 = vld [vmem:[%s2 + $0x6b8] sm:$0xff]
    %v247 = vld [vmem:[%s2 + $0x6c0] sm:$0xff]
    %v248 = vld [vmem:[%s2 + $0x6c8] sm:$0xff]
    %v249 = vld [vmem:[%s2 + $0x6d0] sm:$0xff]
    %v250 = vld [vmem:[%s2 + $0x6d8] sm:$0xff]
    %v251 = vld [vmem:[%s2 + $0x6e0] sm:$0xff]
    %v252 = vld [vmem:[%s2 + $0x6e8] sm:$0xff]
    %v253 = vld [vmem:[%s2 + $0x6f0] sm:$0xff]
    %v254 = vld [vmem:[%s2 + $0x6f8] sm:$0xff]
    %v255 = vld [vmem:[%s2 + $0x700] sm:$0xff]
    %v256 = vld [vmem:[%s2 + $0x708] sm:$0xff]
    %v257 = vld [vmem:[%s2 + $0x710] sm:$0xff]
    %v258 = vld [vmem:[%s2 + $0x718] sm:$0xff]
    %v259 = vld [vmem:[%s2 + $0x720] sm:$0xff]
    %v260 = vld [vmem:[%s2 + $0x728] sm:$0xff]
    %v261 = vld [vmem:[%s2 + $0x730] sm:$0xff]
    %v262 = vld [vmem:[%s2 + $0x738] sm:$0xff]
    %v263 = vld [vmem:[%s2 + $0x740] sm:$0xff]
    %v264 = vld [vmem:[%s2 + $0x748] sm:$0xff]
    %v265 = vld [vmem:[%s2 + $0x750] sm:$0xff]
    %v266 = vld [vmem:[%s2 + $0x758] sm:$0xff]
    %v267 = vld [vmem:[%s2 + $0x760] sm:$0xff]
    %v268 = vld [vmem:[%s2 + $0x768] sm:$0xff]
    %v269 = vld [vmem:[%s2 + $0x770] sm:$0xff]
    %v270 = vld [vmem:[%s2 + $0x778] sm:$0xff]
    %v271 = vld [vmem:[%s2 + $0x780] sm:$0xff]
    %v272 = vld [vmem:[%s2 + $0x788] sm:$0xff]
    %v273 = vld [vmem:[%s2 + $0x790] sm:$0xff]
    %v274 = vld [vmem:[%s2 + $0x798] sm:$0xff]
    %v275 = vld [vmem:[%s2 + $0x7a0] sm:$0xff]
    %v276 = vld [vmem:[%s2 + $0x7a8] sm:$0xff]
    %v277 = vld [vmem:[%s2 + $0x7b0] sm:$0xff]
    %v278 = vld [vmem:[%s2 + $0x7b8] sm:$0xff]
    %v279 = vld [vmem:[%s2 + $0x7c0] sm:$0xff]
    %v280 = vld [vmem:[%s2 + $0x7c8] sm:$0xff]
    %v281 = vld [vmem:[%s2 + $0x7d0] sm:$0xff]
    %v282 = vld [vmem:[%s2 + $0x7d8] sm:$0xff]
    %v283 = vld [vmem:[%s2 + $0x7e0] sm:$0xff]
    %v284 = vld [vmem:[%s2 + $0x7e8] sm:$0xff]
    %v285 = vld [vmem:[%s2 + $0x7f0] sm:$0xff]
    %v286 = vld [vmem:[%s2 + $0x7f8] sm:$0xff]
    %287 = vmatprep.subr.mxu0 %v32
    %288 = vmatpush1.msra.mxu0 %v31
    %289 = vmatprep.subr.mxu0 %v40
    %290 = vmatpush1.msra.mxu0 %v39
    %291 = vmatprep.subr.mxu0 %v48
    %292 = vmatpush1.msra.mxu0 %v47
    %293 = vmatprep.subr.mxu0 %v56
    %294 = vmatpush1.msra.mxu0 %v55
    %295 = vmatprep.subr.mxu0 %v64
    %296 = vmatpush1.msra.mxu0 %v63
    %297 = vmatprep.subr.mxu0 %v72
    %298 = vmatpush1.msra.mxu0 %v71
    %299 = vmatprep.subr.mxu0 %v80
    %300 = vmatpush1.msra.mxu0 %v79
    %301 = vmatprep.subr.mxu0 %v88
    %302 = vmatpush1.msra.mxu0 %v87
    %303 = vmatprep.subr.mxu0 %v96
    %304 = vmatpush1.msra.mxu0 %v95
    %305 = vmatprep.subr.mxu0 %v104
    %306 = vmatpush1.msra.mxu0 %v103
    %307 = vmatprep.subr.mxu0 %v112
    %308 = vmatpush1.msra.mxu0 %v111
    %309 = vmatprep.subr.mxu0 %v120
    %310 = vmatpush1.msra.mxu0 %v119
    %311 = vmatprep.subr.mxu0 %v128
    %312 = vmatpush1.msra.mxu0 %v127
    %313 = vmatprep.subr.mxu0 %v136
    %314 = vmatpush1.msra.mxu0 %v135
    %315 = vmatprep.subr.mxu0 %v144
    %316 = vmatpush1.msra.mxu0 %v143
    %317 = vmatprep.subr.mxu0 %v152
    %318 = vmatpush1.msra.mxu0 %v151
    %319 = vmatprep.subr.mxu0 %v160
    %320 = vmatpush1.msra.mxu0 %v159
    %321 = vmatprep.subr.mxu0 %v168
    %322 = vmatpush1.msra.mxu0 %v167
    %323 = vmatprep.subr.mxu0 %v176
    %324 = vmatpush1.msra.mxu0 %v175
    %325 = vmatprep.subr.mxu0 %v184
    %326 = vmatpush1.msra.mxu0 %v183
    %327 = vmatprep.subr.mxu0 %v192
    %328 = vmatpush1.msra.mxu0 %v191
    %329 = vmatprep.subr.mxu0 %v200
    %330 = vmatpush1.msra.mxu0 %v199
    %331 = vmatprep.subr.mxu0 %v208
    %332 = vmatpush1.msra.mxu0 %v207
    %333 = vmatprep.subr.mxu0 %v216
    %334 = vmatpush1.msra.mxu0 %v215
    %335 = vmatprep.subr.mxu0 %v224
    %336 = vmatpush1.msra.mxu0 %v223
    %337 = vmatprep.subr.mxu0 %v232
    %338 = vmatpush1.msra.mxu0 %v231
    %339 = vmatprep.subr.mxu0 %v240
    %340 = vmatpush1.msra.mxu0 %v239
    %341 = vmatprep.subr.mxu0 %v248
    %342 = vmatpush1.msra.mxu0 %v247
    %343 = vmatprep.subr.mxu0 %v256
    %344 = vmatpush1.msra.mxu0 %v255
    %345 = vmatprep.subr.mxu0 %v264
    %346 = vmatpush1.msra.mxu0 %v263
    %347 = vmatprep.subr.mxu0 %v272
    %348 = vmatpush1.msra.mxu0 %v271
    %349 = vmatprep.subr.mxu0 %v280
    %350 = vmatpush1.msra.mxu0 %v279
    %351 = vmatprep.mubr.f32.mxu0 %v30
    %352 = vmatmul.mubr.f32.gmra.mrb[0].mxu0 %v29
    %v353 = vpop.f32.mrb[0].mxu0
    %v354 = vadd.f32 0.0, %v353
    %v355 = vpop.f32.mrb[0].mxu0
    %v356 = vadd.f32 0.0, %v355
    %357 = vdwg.mxu0
    %358 = vmatprep.subr.mxu0 %v34
    %359 = vmatpush1.msra.mxu0 %v33
    %360 = vmatprep.subr.mxu0 %v42
    %361 = vmatpush1.msra.mxu0 %v41
    %362 = vmatprep.subr.mxu0 %v50
    %363 = vmatpush1.msra.mxu0 %v49
    %364 = vmatprep.subr.mxu0 %v58
    %365 = vmatpush1.msra.mxu0 %v57
    %366 = vmatprep.subr.mxu0 %v66
    %367 = vmatpush1.msra.mxu0 %v65
    %368 = vmatprep.subr.mxu0 %v74
    %369 = vmatpush1.msra.mxu0 %v73
    %370 = vmatprep.subr.mxu0 %v82
    %371 = vmatpush1.msra.mxu0 %v81
    %372 = vmatprep.subr.mxu0 %v90
    %373 = vmatpush1.msra.mxu0 %v89
    %374 = vmatprep.subr.mxu0 %v98
    %375 = vmatpush1.msra.mxu0 %v97
    %376 = vmatprep.subr.mxu0 %v106
    %377 = vmatpush1.msra.mxu0 %v105
    %378 = vmatprep.subr.mxu0 %v114
    %379 = vmatpush1.msra.mxu0 %v113
    %380 = vmatprep.subr.mxu0 %v122
    %381 = vmatpush1.msra.mxu0 %v121
    %382 = vmatprep.subr.mxu0 %v130
    %383 = vmatpush1.msra.mxu0 %v129
    %384 = vmatprep.subr.mxu0 %v138
    %385 = vmatpush1.msra.mxu0 %v137
    %386 = vmatprep.subr.mxu0 %v146
    %387 = vmatpush1.msra.mxu0 %v145
    %388 = vmatprep.subr.mxu0 %v154
    %389 = vmatpush1.msra.mxu0 %v153
    %390 = vmatprep.subr.mxu0 %v162
    %391 = vmatpush1.msra.mxu0 %v161
    %392 = vmatprep.subr.mxu0 %v170
    %393 = vmatpush1.msra.mxu0 %v169
    %394 = vmatprep.subr.mxu0 %v178
    %395 = vmatpush1.msra.mxu0 %v177
    %396 = vmatprep.subr.mxu0 %v186
    %397 = vmatpush1.msra.mxu0 %v185
    %398 = vmatprep.subr.mxu0 %v194
    %399 = vmatpush1.msra.mxu0 %v193
    %400 = vmatprep.subr.mxu0 %v202
    %401 = vmatpush1.msra.mxu0 %v201
    %402 = vmatprep.subr.mxu0 %v210
    %403 = vmatpush1.msra.mxu0 %v209
    %404 = vmatprep.subr.mxu0 %v218
    %405 = vmatpush1.msra.mxu0 %v217
    %406 = vmatprep.subr.mxu0 %v226
    %407 = vmatpush1.msra.mxu0 %v225
    %408 = vmatprep.subr.mxu0 %v234
    %409 = vmatpush1.msra.mxu0 %v233
    %410 = vmatprep.subr.mxu0 %v242
    %411 = vmatpush1.msra.mxu0 %v241
    %412 = vmatprep.subr.mxu0 %v250
    %413 = vmatpush1.msra.mxu0 %v249
    %414 = vmatprep.subr.mxu0 %v258
    %415 = vmatpush1.msra.mxu0 %v257
    %416 = vmatprep.subr.mxu0 %v266
    %417 = vmatpush1.msra.mxu0 %v265
    %418 = vmatprep.subr.mxu0 %v274
    %419 = vmatpush1.msra.mxu0 %v273
    %420 = vmatprep.subr.mxu0 %v282
    %421 = vmatpush1.msra.mxu0 %v281
    %422 = vmatprep.mubr.f32.mxu0 %v30
    %423 = vmatmul.mubr.f32.gmra.mrb[0].mxu0 %v29
    %v424 = vpop.f32.mrb[0].mxu0
    %v425 = vadd.f32 0.0, %v424
    %v426 = vpop.f32.mrb[0].mxu0
    %v427 = vadd.f32 0.0, %v426
    %428 = vdwg.mxu0
    %429 = vmatprep.subr.mxu0 %v36
    %430 = vmatpush1.msra.mxu0 %v35
    %431 = vmatprep.subr.mxu0 %v44
    %432 = vmatpush1.msra.mxu0 %v43
    %433 = vmatprep.subr.mxu0 %v52
    %434 = vmatpush1.msra.mxu0 %v51
    %435 = vmatprep.subr.mxu0 %v60
    %436 = vmatpush1.msra.mxu0 %v59
    %437 = vmatprep.subr.mxu0 %v68
    %438 = vmatpush1.msra.mxu0 %v67
    %439 = vmatprep.subr.mxu0 %v76
    %440 = vmatpush1.msra.mxu0 %v75
    %441 = vmatprep.subr.mxu0 %v84
    %442 = vmatpush1.msra.mxu0 %v83
    %443 = vmatprep.subr.mxu0 %v92
    %444 = vmatpush1.msra.mxu0 %v91
    %445 = vmatprep.subr.mxu0 %v100
    %446 = vmatpush1.msra.mxu0 %v99
    %447 = vmatprep.subr.mxu0 %v108
    %448 = vmatpush1.msra.mxu0 %v107
    %449 = vmatprep.subr.mxu0 %v116
    %450 = vmatpush1.msra.mxu0 %v115
    %451 = vmatprep.subr.mxu0 %v124
    %452 = vmatpush1.msra.mxu0 %v123
    %453 = vmatprep.subr.mxu0 %v132
    %454 = vmatpush1.msra.mxu0 %v131
    %455 = vmatprep.subr.mxu0 %v140
    %456 = vmatpush1.msra.mxu0 %v139
    %457 = vmatprep.subr.mxu0 %v148
    %458 = vmatpush1.msra.mxu0 %v147
    %459 = vmatprep.subr.mxu0 %v156
    %460 = vmatpush1.msra.mxu0 %v155
    %461 = vmatprep.subr.mxu0 %v164
    %462 = vmatpush1.msra.mxu0 %v163
    %463 = vmatprep.subr.mxu0 %v172
    %464 = vmatpush1.msra.mxu0 %v171
    %465 = vmatprep.subr.mxu0 %v180
    %466 = vmatpush1.msra.mxu0 %v179
    %467 = vmatprep.subr.mxu0 %v188
    %468 = vmatpush1.msra.mxu0 %v187
    %469 = vmatprep.subr.mxu0 %v196
    %470 = vmatpush1.msra.mxu0 %v195
    %471 = vmatprep.subr.mxu0 %v204
    %472 = vmatpush1.msra.mxu0 %v203
    %473 = vmatprep.subr.mxu0 %v212
    %474 = vmatpush1.msra.mxu0 %v211
    %475 = vmatprep.subr.mxu0 %v220
    %476 = vmatpush1.msra.mxu0 %v219
    %477 = vmatprep.subr.mxu0 %v228
    %478 = vmatpush1.msra.mxu0 %v227
    %479 = vmatprep.subr.mxu0 %v236
    %480 = vmatpush1.msra.mxu0 %v235
    %481 = vmatprep.subr.mxu0 %v244
    %482 = vmatpush1.msra.mxu0 %v243
    %483 = vmatprep.subr.mxu0 %v252
    %484 = vmatpush1.msra.mxu0 %v251
    %485 = vmatprep.subr.mxu0 %v260
    %486 = vmatpush1.msra.mxu0 %v259
    %487 = vmatprep.subr.mxu0 %v268
    %488 = vmatpush1.msra.mxu0 %v267
    %489 = vmatprep.subr.mxu0 %v276
    %490 = vmatpush1.msra.mxu0 %v275
    %491 = vmatprep.subr.mxu0 %v284
    %492 = vmatpush1.msra.mxu0 %v283
    %493 = vmatprep.mubr.f32.mxu0 %v30
    %494 = vmatmul.mubr.f32.gmra.mrb[0].mxu0 %v29
    %v495 = vpop.f32.mrb[0].mxu0
    %v496 = vadd.f32 0.0, %v495
    %v497 = vpop.f32.mrb[0].mxu0
    %v498 = vadd.f32 0.0, %v497
    %499 = vdwg.mxu0
    %500 = vmatprep.subr.mxu0 %v38
    %501 = vmatpush1.msra.mxu0 %v37
    %502 = vmatprep.subr.mxu0 %v46
    %503 = vmatpush1.msra.mxu0 %v45
    %504 = vmatprep.subr.mxu0 %v54
    %505 = vmatpush1.msra.mxu0 %v53
    %506 = vmatprep.subr.mxu0 %v62
    %507 = vmatpush1.msra.mxu0 %v61
    %508 = vmatprep.subr.mxu0 %v70
    %509 = vmatpush1.msra.mxu0 %v69
    %510 = vmatprep.subr.mxu0 %v78
    %511 = vmatpush1.msra.mxu0 %v77
    %512 = vmatprep.subr.mxu0 %v86
    %513 = vmatpush1.msra.mxu0 %v85
    %514 = vmatprep.subr.mxu0 %v94
    %515 = vmatpush1.msra.mxu0 %v93
    %516 = vmatprep.subr.mxu0 %v102
    %517 = vmatpush1.msra.mxu0 %v101
    %518 = vmatprep.subr.mxu0 %v110
    %519 = vmatpush1.msra.mxu0 %v109
    %520 = vmatprep.subr.mxu0 %v118
    %521 = vmatpush1.msra.mxu0 %v117
    %522 = vmatprep.subr.mxu0 %v126
    %523 = vmatpush1.msra.mxu0 %v125
    %524 = vmatprep.subr.mxu0 %v134
    %525 = vmatpush1.msra.mxu0 %v133
    %526 = vmatprep.subr.mxu0 %v142
    %527 = vmatpush1.msra.mxu0 %v141
    %528 = vmatprep.subr.mxu0 %v150
    %529 = vmatpush1.msra.mxu0 %v149
    %530 = vmatprep.subr.mxu0 %v158
    %531 = vmatpush1.msra.mxu0 %v157
    %532 = vmatprep.subr.mxu0 %v166
    %533 = vmatpush1.msra.mxu0 %v165
    %534 = vmatprep.subr.mxu0 %v174
    %535 = vmatpush1.msra.mxu0 %v173
    %536 = vmatprep.subr.mxu0 %v182
    %537 = vmatpush1.msra.mxu0 %v181
    %538 = vmatprep.subr.mxu0 %v190
    %539 = vmatpush1.msra.mxu0 %v189
    %540 = vmatprep.subr.mxu0 %v198
    %541 = vmatpush1.msra.mxu0 %v197
    %542 = vmatprep.subr.mxu0 %v206
    %543 = vmatpush1.msra.mxu0 %v205
    %544 = vmatprep.subr.mxu0 %v214
    %545 = vmatpush1.msra.mxu0 %v213
    %546 = vmatprep.subr.mxu0 %v222
    %547 = vmatpush1.msra.mxu0 %v221
    %548 = vmatprep.subr.mxu0 %v230
    %549 = vmatpush1.msra.mxu0 %v229
    %550 = vmatprep.subr.mxu0 %v238
    %551 = vmatpush1.msra.mxu0 %v237
    %552 = vmatprep.subr.mxu0 %v246
    %553 = vmatpush1.msra.mxu0 %v245
    %554 = vmatprep.subr.mxu0 %v254
    %555 = vmatpush1.msra.mxu0 %v253
    %556 = vmatprep.subr.mxu0 %v262
    %557 = vmatpush1.msra.mxu0 %v261
    %558 = vmatprep.subr.mxu0 %v270
    %559 = vmatpush1.msra.mxu0 %v269
    %560 = vmatprep.subr.mxu0 %v278
    %561 = vmatpush1.msra.mxu0 %v277
    %562 = vmatprep.subr.mxu0 %v286
    %563 = vmatpush1.msra.mxu0 %v285
    %564 = vmatprep.mubr.f32.mxu0 %v30
    %565 = vmatmul.mubr.f32.gmra.mrb[0].mxu0 %v29
    %v566 = vpop.f32.mrb[0].mxu0
    %v567 = vadd.f32 0.0, %v566
    %v568 = vpop.f32.mrb[0].mxu0
    %v569 = vadd.f32 0.0, %v568
    %570 = vdwg.mxu0
    %v571 = vlaneseq
    %v572 = vshrl.u32 %v571, 7
    %vm573 = vcmp.lt.s32.totalorder %v572, 0
    %v574 = vsub.s32 0, %v572
    %v575 = vsel %vm573, %v574, %v572
    %v576 = vmul.u32.u64.compose %v575, 2863311531
    %v577 = vextract.low.u32 %v576
    %v578 = vextract.high.u32 %v576
    %v579 = vshrl.u32 %v578, 1
    %v580 = vmul.u32 %v579, 3
    %v581 = vsub.s32 %v575, %v580
    %v582 = vsub.s32 0, %v581
    %v583 = vsel %vm573, %v582, %v581
    %vm584 = vcmp.ne.s32.totalorder %v583, 0
    %vm585 = vcmp.lt.s32.totalorder %v583, 0
    %vm586 = vmand %vm585, %vm584
    %v587 = vadd.s32 %v583, 3
    %v588 = vsel %vm586, %v587, %v583
    %vm589 = vcmp.eq.s32.totalorder %v588, 0
    %vm590 = vcmp.eq.s32.totalorder %v588, 1
    %v591 = vsel %vm590, 0.017507004, 0.017429193
    %v592 = vsel %vm589, 0.017124753, %v591
    %v593 = vsel %vm590, -2.0357144, -1.8044444
    %v594 = vsel %vm589, -2.117904, %v593
    %v595 = vmul.f32 %v354, %v592
    %v596 = vmul.f32 %v356, %v592
    %v597 = vmul.f32 %v425, %v592
    %v598 = vmul.f32 %v427, %v592
    %v599 = vmul.f32 %v496, %v592
    %v600 = vmul.f32 %v498, %v592
    %v601 = vmul.f32 %v567, %v592
    %v602 = vmul.f32 %v569, %v592
    %v603 = vadd.f32 %v595, %v594
    %v604 = vadd.f32 %v596, %v594
    %v605 = vadd.f32 %v597, %v594
    %v606 = vadd.f32 %v598, %v594
    %v607 = vadd.f32 %v599, %v594
    %v608 = vadd.f32 %v600, %v594
    %v609 = vadd.f32 %v601, %v594
    %v610 = vadd.f32 %v602, %v594
    %611 = vst [vmem:[%s3] sm:$0xff] %v603
    %612 = vst [vmem:[%s3 + $0x8] sm:$0xff] %v604
    %613 = vst [vmem:[%s3 + $0x10] sm:$0xff] %v605
    %614 = vst [vmem:[%s3 + $0x18] sm:$0xff] %v606
    %615 = vst [vmem:[%s3 + $0x20] sm:$0xff] %v607
    %616 = vst [vmem:[%s3 + $0x28] sm:$0xff] %v608
    %617 = vst [vmem:[%s3 + $0x30] sm:$0xff] %v609
    %618 = vst [vmem:[%s3 + $0x38] sm:$0xff] %v610
    %v619 = vlaneseq
    %v620 = vand.u32 %v619, 127
    %v621 = vadd.s32 %v620, 128
    %s622 = sld [smem:[#allocation2]]
    %v623 = vstv %s622
    %vm624 = vcmp.eq.s32.totalorder %v620, %v623
    %vm625 = vcmp.eq.s32.totalorder %v621, %v623
    %s626 = sld [smem:[#allocation2 + $0x1]]
    %v627 = vstv %s626
    %vm628 = vcmp.eq.s32.totalorder %v620, %v627
    %vm629 = vcmp.eq.s32.totalorder %v621, %v627
    %s630 = sld [smem:[#allocation2 + $0x2]]
    %v631 = vstv %s630
    %vm632 = vcmp.eq.s32.totalorder %v620, %v631
    %vm633 = vcmp.eq.s32.totalorder %v621, %v631
    %s634 = sld [smem:[#allocation2 + $0x3]]
    %v635 = vstv %s634
    %vm636 = vcmp.eq.s32.totalorder %v620, %v635
    %vm637 = vcmp.eq.s32.totalorder %v621, %v635
    %s638 = sld [smem:[#allocation2 + $0x4]]
    %v639 = vstv %s638
    %vm640 = vcmp.eq.s32.totalorder %v620, %v639
    %vm641 = vcmp.eq.s32.totalorder %v621, %v639
    %s642 = sld [smem:[#allocation2 + $0x5]]
    %v643 = vstv %s642
    %vm644 = vcmp.eq.s32.totalorder %v620, %v643
    %vm645 = vcmp.eq.s32.totalorder %v621, %v643
    %s646 = sld [smem:[#allocation2 + $0x6]]
    %v647 = vstv %s646
    %vm648 = vcmp.eq.s32.totalorder %v620, %v647
    %vm649 = vcmp.eq.s32.totalorder %v621, %v647
    %s650 = sld [smem:[#allocation2 + $0x7]]
    %v651 = vstv %s650
    %vm652 = vcmp.eq.s32.totalorder %v620, %v651
    %vm653 = vcmp.eq.s32.totalorder %v621, %v651
    %vm654 = vmor %vm624, %vm628
    %vm655 = vmor %vm625, %vm629
    %vm656 = vmor %vm632, %vm636
    %vm657 = vmor %vm633, %vm637
    %vm658 = vmor %vm640, %vm644
    %vm659 = vmor %vm641, %vm645
    %vm660 = vmor %vm648, %vm652
    %vm661 = vmor %vm649, %vm653
    %vm662 = vmor %vm654, %vm656
    %vm663 = vmor %vm655, %vm657
    %vm664 = vmor %vm658, %vm660
    %vm665 = vmor %vm659, %vm661
    %vm666 = vmor %vm662, %vm664
    %vm667 = vmor %vm663, %vm665
    %v668 = vsel %vm666, 1.0, 0.0
    %v669 = vsel %vm667, 1.0, 0.0
    %v672 = vcombine.low %v668, %v669
    %v674 = vunpack.c.l.s4 1966171168
    %v675 = vunpack.c.0.s8 %v674
    %v676 = vlaneseq
    %v677 = vshrl.u32 %v676, 7
    %v678 = vsub.s32 %v675, %v677
    %v679 = vrot.slane %v672, %v678
    %v681 = vunpack.c.l.s4 1966171168
    %v682 = vunpack.c.0.s8 %v681
    %v683 = vlaneseq
    %v684 = vshrl.u32 %v683, 7
    %v685 = vsub.s32 %v682, %v684
    %v686 = vrot.slane %v679, %v685
    %v688 = vlaneseq
    %vm689 = vcmp.ge.s32.totalorder %v688, 0
    %vm690 = vcmp.lt.s32.totalorder %v688, 256
    %vm691 = vmand %vm689, %vm690
    %692 = vst.msk [vmem:[%s4] sm:$0x3] %vm691, %v686
    // Predicated region
    $region18: #{inference_forward.1} parent=1 // pred_check
      _
    $region19: #{inference_forward.1} parent=1 // pred_check_branch
      %694 = sbr.rel (0) target = $region21
    $region20: #{inference_forward.1} parent=1 // pred_region
      _
    $region21: #{inference_forward.1} parent=1 // pred_fallthru
      _
    // Predicated region
    $region22: #{inference_forward.1} parent=1 // pred_check
      _
    $region23: #{inference_forward.1} parent=1 // pred_check_branch
      %696 = sbr.rel (0) target = $region25
    $region24: #{inference_forward.1} parent=1 // pred_region
      _
    $region25: #{inference_forward.1} parent=1 // pred_fallthru
      _
    // Predicated region
    $region26: #{inference_forward.1} parent=1 // pred_check
      _
    $region27: #{inference_forward.1} parent=1 // pred_check_branch
      %698 = sbr.rel (0) target = $region29
    $region28: #{inference_forward.1} parent=1 // pred_region
      _
    $region29: #{inference_forward.1} parent=1 // pred_fallthru
      _
    // Predicated region
    $region30: #{inference_forward.1} parent=1 // pred_check
      _
    $region31: #{inference_forward.1} parent=1 // pred_check_branch
      %700 = sbr.rel (0) target = $region33
    $region32: #{inference_forward.1} parent=1 // pred_region
      _
    $region33: #{inference_forward.1} parent=1 // pred_fallthru
      _
    %701 = vsyncpa [#allocation3], 1

</llo_original>
